<compile_context>
chip_gen: v5e
topology: v5e:2x2
jax: 0.10.0
libtpu: 0.0.40
codegen_flags: <defaults>
</compile_context>

<pallas_src>
import jax
import jax.numpy as jnp
from jax.experimental import pallas as pl
from jax.experimental.pallas import tpu as pltpu


def _round_up(x, m):
    return ((x + m - 1) // m) * m


_VMEM_LIMIT = 48 * 1024 * 1024  # fits under v7x's 64 MiB physical VMEM


# ---------------------------------------------------------------------------
# Pallas kernel 1: K-tiled GEMM + bias    out = x @ w_t + bias
# grid = (M tiles, N tiles, K tiles); f32 VMEM accumulator; bias added and the
# output stored on the last K step.  Used for the hoisted input projection and
# the (large, V-wide) output projection.
# ---------------------------------------------------------------------------
def _linear_kernel(x_ref, w_ref, b_ref, o_ref, acc_ref):
    @pl.when(pl.program_id(2) == 0)
    def _():
        acc_ref[...] = jnp.zeros_like(acc_ref)

    acc_ref[...] += jnp.dot(
        x_ref[...], w_ref[...], preferred_element_type=jnp.float32
    )

    @pl.when(pl.program_id(2) == pl.num_programs(2) - 1)
    def _():
        o_ref[...] = (acc_ref[...] + b_ref[...]).astype(o_ref.dtype)


def linear_pallas(x, w_t, bias, tm=512, tn=512, tk=512):
    """x: (M, K) f32; w_t: (K, N) f32; bias: (N,) or (1, N). Returns (M, N) f32."""
    M, K = x.shape
    Kw, N = w_t.shape
    assert K == Kw, (K, Kw)
    bias = bias.reshape(1, N)

    tm = min(tm, _round_up(M, 8))        # sublane-aligned row tile
    tn = min(tn, _round_up(N, 128))      # lane-dense column tile
    tk = min(tk, K)                      # K tile (whole K when small)
    Mp = _round_up(M, tm)
    Np = _round_up(N, tn)
    Kp = _round_up(K, tk)

    x_p = x
    w_p = w_t
    b_p = bias
    if Mp != M or Kp != K:
        x_p = jnp.pad(x, ((0, Mp - M), (0, Kp - K)))
    if Kp != K or Np != N:
        w_p = jnp.pad(w_t, ((0, Kp - K), (0, Np - N)))
    if Np != N:
        b_p = jnp.pad(bias, ((0, 0), (0, Np - N)))

    out = pl.pallas_call(
        _linear_kernel,
        out_shape=jax.ShapeDtypeStruct((Mp, Np), jnp.float32),
        grid_spec=pltpu.PrefetchScalarGridSpec(
            num_scalar_prefetch=0,
            grid=(Mp // tm, Np // tn, Kp // tk),
            in_specs=[
                pl.BlockSpec((tm, tk), lambda i, j, k: (i, k)),
                pl.BlockSpec((tk, tn), lambda i, j, k: (k, j)),
                pl.BlockSpec((1, tn), lambda i, j, k: (0, j)),
            ],
            out_specs=pl.BlockSpec((tm, tn), lambda i, j, k: (i, j)),
            scratch_shapes=[pltpu.VMEM((tm, tn), jnp.float32)],
        ),
        compiler_params=pltpu.CompilerParams(
            dimension_semantics=("parallel", "parallel", "arbitrary"),
            vmem_limit_bytes=_VMEM_LIMIT,
        ),
    )(x_p, w_p, b_p)
    return out[:M, :N]


# ---------------------------------------------------------------------------
# Pallas kernel 2: RNN recurrence   h_t = tanh(ih_t + h_{t-1} @ Whh^T)
# `ih` already contains x_t @ Wih^T + (b_ih + b_hh) (hoisted GEMM).
# Grid iterates sequentially over chunks of T (t_chunk=64 to amortize
# per-grid-step overhead); inside each chunk an unrolled fori_loop walks the
# time steps with W_hh and the hidden state resident in VMEM/vregs.
# h_scratch carries the hidden state across grid steps.
# ---------------------------------------------------------------------------
def _rnn_chunk_kernel(ih_ref, whh_ref, o_ref, h_scratch):
    @pl.when(pl.program_id(0) == 0)
    def _():
        h_scratch[...] = jnp.zeros_like(h_scratch)

    whh = whh_ref[...]                              # (Hp, Hp), VMEM-resident
    t_chunk = ih_ref.shape[0]

    # TODO(synk): keep W_hh stationary in the MXU across the unrolled chunk via
    # pltpu.matmul_push_rhs / matmul_acc_lhs / matmul_pop to avoid re-pushing
    # the Hp-wide weights every step when the LHS is only ~Bp rows.
    def step(t, h):
        h_new = jnp.tanh(
            ih_ref[t]                               # (Bp, Hp)
            + jnp.dot(h, whh, preferred_element_type=jnp.float32)
        )
        o_ref[t] = h_new.astype(o_ref.dtype)
        return h_new

    h_final = jax.lax.fori_loop(0, t_chunk, step, h_scratch[...], unroll=True)
    h_scratch[...] = h_final


def rnn_forward(ih, whh_t, t_chunk=64):
    """ih: (T, Bp, Hp) f32 (input projection, bias included); whh_t: (Hp, Hp)."""
    T, Bp, Hp = ih.shape
    t_chunk = min(t_chunk, T)
    Tp = _round_up(T, t_chunk)
    if Tp != T:
        ih = jnp.pad(ih, ((0, Tp - T), (0, 0), (0, 0)))

    # TODO(synk): on v7x, add a leading size-2 "parallel" grid axis over Bp
    # halves (per-core h_scratch, Whh duplicated) once Bp >= 16, so the
    # recurrence uses both TensorCores.
    # TODO(synk): give the constant Whh BlockSpec pipeline_mode=pl.Buffered(1)
    # (or DMA it once into scratch) to reclaim its double-buffer VMEM on v7x.
    hidden = pl.pallas_call(
        _rnn_chunk_kernel,
        out_shape=jax.ShapeDtypeStruct((Tp, Bp, Hp), jnp.float32),
        grid_spec=pltpu.PrefetchScalarGridSpec(
            num_scalar_prefetch=0,
            grid=(Tp // t_chunk,),
            in_specs=[
                pl.BlockSpec((t_chunk, Bp, Hp), lambda c: (c, 0, 0)),
                pl.BlockSpec((Hp, Hp), lambda c: (0, 0)),
            ],
            out_specs=pl.BlockSpec((t_chunk, Bp, Hp), lambda c: (c, 0, 0)),
            scratch_shapes=[pltpu.VMEM((Bp, Hp), jnp.float32)],
        ),
        compiler_params=pltpu.CompilerParams(
            dimension_semantics=("arbitrary",),      # recurrence => sequential
            vmem_limit_bytes=_VMEM_LIMIT,
        ),
    )(ih, whh_t)
    return hidden[:T]


# ---------------------------------------------------------------------------
# Full model forward.
# ---------------------------------------------------------------------------
def rnn_language_model_forward(input_tokens, params):
    T, B = input_tokens.shape
    E = params["embedding"].shape[1]
    H = params["w_hh"].shape[0]
    V = params["w_out"].shape[0]

    Bp = _round_up(B, 8)        # sublane-dense batch (recurrence only)
    Hp = _round_up(H, 128)      # lane-dense hidden

    # Embedding gather (plain-JAX glue).
    # TODO(synk): fold the gather into the input-projection kernel via
    # scalar-prefetched token ids + pl.Element row gather when T*B*E is large.
    emb = params["embedding"][input_tokens]                         # (T, B, E)

    # Hoisted input projection: one GEMM over exactly T*B rows (no batch pad).
    wih_t = jnp.pad(params["w_ih"].T, ((0, 0), (0, Hp - H)))        # (E, Hp)
    bias = jnp.pad((params["b_ih"] + params["b_hh"]).reshape(1, H),
                   ((0, 0), (0, Hp - H)))                           # (1, Hp)
    ih = linear_pallas(emb.reshape(T * B, E), wih_t, bias)          # (T*B, Hp)
    ih = ih.reshape(T, B, Hp)
    if Bp != B:                                                     # pad only for recurrence
        ih = jnp.pad(ih, ((0, 0), (0, Bp - B), (0, 0)))             # (T, Bp, Hp)

    # Recurrence (padded hidden lanes stay exactly zero: Whh pad cols are zero;
    # padded batch rows are zero-ih and are sliced off below).
    whh_t = jnp.pad(params["w_hh"].T, ((0, Hp - H), (0, Hp - H)))   # (Hp, Hp)
    hidden = rnn_forward(ih, whh_t)                                 # (T, Bp, Hp)
    hidden = hidden[:, :B, :]                                       # (T, B, Hp)

    # Output projection: lane-dense K-tiled GEMM over exactly (T*B, V) rows.
    # TODO(synk): fuse this per RNN chunk inside the recurrence kernel to avoid
    # the HBM round-trip of the hidden tensor.
    # TODO(synk): optionally cast operands to bf16 (f32 accumulation) on
    # v6e/v7x; requires relaxing the allclose tolerance below.
    wout_t = jnp.pad(params["w_out"].T, ((0, Hp - H), (0, 0)))      # (Hp, V)
    logits = linear_pallas(hidden.reshape(T * B, Hp), wout_t,
                           params["b_out"], tm=1024)                # (T*B, V)
    logits = logits.reshape(T, B, V)                                # (T, B, V)

    # Final permute(0, 2, 1) kept in XLA: with small B the B axis is not
    # lane-dense, so fusing it into the kernel would force masked stores.
    return jnp.transpose(logits, (0, 2, 1))                         # (T, V, B)


def init_params(key, vocab_size, embedding_dim, hidden_dim, pad_index=0):
    ks = jax.random.split(key, 6)
    emb = jax.random.normal(ks[0], (vocab_size, embedding_dim), jnp.float32)
    emb = emb.at[pad_index].set(0.0)                 # padding_idx row is zero
    k_rnn = 1.0 / jnp.sqrt(hidden_dim)
    k_out = 1.0 / jnp.sqrt(hidden_dim)
    return {
        "embedding": emb,
        "w_ih": jax.random.uniform(ks[1], (hidden_dim, embedding_dim),
                                   jnp.float32, -k_rnn, k_rnn),
        "w_hh": jax.random.uniform(ks[2], (hidden_dim, hidden_dim),
                                   jnp.float32, -k_rnn, k_rnn),
        "b_ih": jax.random.uniform(ks[3], (hidden_dim,), jnp.float32,
                                   -k_rnn, k_rnn),
        "b_hh": jax.random.uniform(ks[4], (hidden_dim,), jnp.float32,
                                   -k_rnn, k_rnn),
        "w_out": jax.random.uniform(ks[5], (vocab_size, hidden_dim),
                                    jnp.float32, -k_out, k_out),
        "b_out": jnp.zeros((vocab_size,), jnp.float32),
    }


# Pure-JAX reference for correctness checking.
def _reference_forward(tokens, p):
    emb = p["embedding"][tokens]                                   # (T, B, E)

    def step(h, x_t):
        h_new = jnp.tanh(x_t @ p["w_ih"].T + p["b_ih"]
                         + h @ p["w_hh"].T + p["b_hh"])
        return h_new, h_new

    h0 = jnp.zeros((emb.shape[1], p["w_hh"].shape[0]), jnp.float32)
    _, hs = jax.lax.scan(step, h0, emb)                            # (T, B, H)
    logits = hs @ p["w_out"].T + p["b_out"]                        # (T, B, V)
    return jnp.transpose(logits, (0, 2, 1))


if __name__ == "__main__":
    # Small shapes consistent with the module's forward pass.
    T, B = 8, 4                      # (seq_len, batch) — nn.RNN batch_first=False
    vocab_size, embedding_dim, hidden_dim = 256, 32, 32
    pad_index = 0

    key = jax.random.PRNGKey(0)
    k_tok, k_par = jax.random.split(key)
    params = init_params(k_par, vocab_size, embedding_dim, hidden_dim, pad_index)
    input_tokens = jax.random.randint(k_tok, (T, B), 0, vocab_size, jnp.int32)

    out = jax.jit(rnn_language_model_forward)(input_tokens, params)
    out = jax.block_until_ready(out)

    ref = _reference_forward(input_tokens, params)
    assert out.shape == (T, vocab_size, B), out.shape
    assert jnp.allclose(out, ref, atol=1e-5, rtol=1e-5), "mismatch vs reference"
    print("KERNEL_OK")
</pallas_src>

<mosaic_0001>
module attributes {stable_mosaic.version = 11 : i64} {
  func.func @_linear_kernel(%arg0: i32, %arg1: i32, %arg2: i32, %arg3: memref<32x32xf32, #tpu.memory_space<vmem>>, %arg4: memref<32x128xf32, #tpu.memory_space<vmem>>, %arg5: memref<1x128xf32, #tpu.memory_space<vmem>>, %arg6: memref<32x128xf32, #tpu.memory_space<vmem>>, %arg7: memref<32x128xf32, #tpu.memory_space<vmem>>) attributes {dimension_semantics = [#tpu.dimension_semantics<parallel>, #tpu.dimension_semantics<parallel>, #tpu.dimension_semantics<arbitrary>], iteration_bounds = array<i64: 1, 1, 1>, scalar_prefetch = 0 : i64, scratch_operands = 1 : i64, tpu.core_type = #tpu.core_type<tc>, window_params = [{transform_indices = @transform_0, window_bounds = array<i64: 32, 32>}, {transform_indices = @transform_1, window_bounds = array<i64: 32, 128>}, {transform_indices = @transform_2, window_bounds = array<i64: 1, 128>}, {transform_indices = @transform_3, window_bounds = array<i64: 32, 128>}]} {
    %c0_i32 = arith.constant 0 : i32
    %0 = arith.cmpi eq, %arg2, %c0_i32 : i32
    %1 = arith.extui %0 : i1 to i32
    %c0_i32_0 = arith.constant 0 : i32
    %2 = arith.cmpi ne, %1, %c0_i32_0 : i32
    scf.if %2 {
      %cst_10 = arith.constant 0.000000e+00 : f32
      %12 = vector.broadcast %cst_10 : f32 to vector<32x128xf32>
      %c0_11 = arith.constant 0 : index
      %c0_12 = arith.constant 0 : index
      %13 = vector.load %arg7[%c0_11, %c0_12] : memref<32x128xf32, #tpu.memory_space<vmem>>, vector<32x128xf32>
      tpu.vector_store %arg7[%c0_11, %c0_12], %12 {strides = array<i32>} : memref<32x128xf32, #tpu.memory_space<vmem>>, vector<32x128xf32>,
    } else {
    }
    %c0 = arith.constant 0 : index
    %c0_1 = arith.constant 0 : index
    %3 = vector.load %arg7[%c0, %c0_1] : memref<32x128xf32, #tpu.memory_space<vmem>>, vector<32x128xf32>
    %c0_2 = arith.constant 0 : index
    %c0_3 = arith.constant 0 : index
    %4 = vector.load %arg3[%c0_2, %c0_3] : memref<32x32xf32, #tpu.memory_space<vmem>>, vector<32x32xf32>
    %c0_4 = arith.constant 0 : index
    %c0_5 = arith.constant 0 : index
    %5 = vector.load %arg4[%c0_4, %c0_5] : memref<32x128xf32, #tpu.memory_space<vmem>>, vector<32x128xf32>
    %cst = arith.constant dense<0.000000e+00> : vector<32x128xf32>
    %6 = tpu.matmul %4, %5, %cst {dimension_numbers = #tpu.dot_dimension_numbers<[1], [0], [0], [1], [0, 0, 1, 1], [], []>} : vector<32x32xf32>, vector<32x128xf32>, vector<32x128xf32> -> vector<32x128xf32>
    %7 = arith.addf %3, %6 : vector<32x128xf32>
    %c0_6 = arith.constant 0 : index
    %c0_7 = arith.constant 0 : index
    %8 = vector.load %arg7[%c0_6, %c0_7] : memref<32x128xf32, #tpu.memory_space<vmem>>, vector<32x128xf32>
    tpu.vector_store %arg7[%c0_6, %c0_7], %7 {strides = array<i32>} : memref<32x128xf32, #tpu.memory_space<vmem>>, vector<32x128xf32>,
    %c0_i32_8 = arith.constant 0 : i32
    %9 = arith.cmpi eq, %arg2, %c0_i32_8 : i32
    %10 = arith.extui %9 : i1 to i32
    %c0_i32_9 = arith.constant 0 : i32
    %11 = arith.cmpi ne, %10, %c0_i32_9 : i32
    scf.if %11 {
      %c0_10 = arith.constant 0 : index
      %c0_11 = arith.constant 0 : index
      %12 = vector.load %arg7[%c0_10, %c0_11] : memref<32x128xf32, #tpu.memory_space<vmem>>, vector<32x128xf32>
      %c0_12 = arith.constant 0 : index
      %c0_13 = arith.constant 0 : index
      %13 = vector.load %arg5[%c0_12, %c0_13] : memref<1x128xf32, #tpu.memory_space<vmem>>, vector<1x128xf32>
      %14 = vector.broadcast %13 : vector<1x128xf32> to vector<32x128xf32>
      %15 = arith.addf %12, %14 : vector<32x128xf32>
      %c0_14 = arith.constant 0 : index
      %c0_15 = arith.constant 0 : index
      %16 = vector.load %arg6[%c0_14, %c0_15] : memref<32x128xf32, #tpu.memory_space<vmem>>, vector<32x128xf32>
      tpu.vector_store %arg6[%c0_14, %c0_15], %15 {strides = array<i32>} : memref<32x128xf32, #tpu.memory_space<vmem>>, vector<32x128xf32>,
    } else {
    }
    return
  }
  func.func @transform_0(%arg0: i32, %arg1: i32, %arg2: i32) -> (i32, i32) {
    %c0_i32 = arith.constant 0 : i32
    return %arg0, %arg2 : i32, i32
  }
  func.func @transform_1(%arg0: i32, %arg1: i32, %arg2: i32) -> (i32, i32) {
    %c0_i32 = arith.constant 0 : i32
    return %arg2, %arg1 : i32, i32
  }
  func.func @transform_2(%arg0: i32, %arg1: i32, %arg2: i32) -> (i32, i32) {
    %c0_i32 = arith.constant 0 : i32
    %c0_i32_0 = arith.constant 0 : i32
    return %c0_i32, %arg1 : i32, i32
  }
  func.func @transform_3(%arg0: i32, %arg1: i32, %arg2: i32) -> (i32, i32) {
    %c0_i32 = arith.constant 0 : i32
    return %arg0, %arg1 : i32, i32
  }
}

module attributes {stable_mosaic.version = 11 : i64} {
  func.func @_rnn_chunk_kernel(%arg0: i32, %arg1: memref<8x8x128xf32, #tpu.memory_space<vmem>>, %arg2: memref<128x128xf32, #tpu.memory_space<vmem>>, %arg3: memref<8x8x128xf32, #tpu.memory_space<vmem>>, %arg4: memref<8x128xf32, #tpu.memory_space<vmem>>) attributes {dimension_semantics = [#tpu.dimension_semantics<arbitrary>], iteration_bounds = array<i64: 1>, scalar_prefetch = 0 : i64, scratch_operands = 1 : i64, tpu.core_type = #tpu.core_type<tc>, window_params = [{transform_indices = @transform_0, window_bounds = array<i64: 8, 8, 128>}, {pipeline_mode = #tpu.pipeline_mode<synchronous>, transform_indices = @transform_1, window_bounds = array<i64: 128, 128>}, {transform_indices = @transform_2, window_bounds = array<i64: 8, 8, 128>}]} {
    %c0_i32 = arith.constant 0 : i32
    %0 = arith.cmpi eq, %arg0, %c0_i32 : i32
    %1 = arith.extui %0 : i1 to i32
    %c0_i32_0 = arith.constant 0 : i32
    %2 = arith.cmpi ne, %1, %c0_i32_0 : i32
    scf.if %2 {
      %cst_46 = arith.constant 0.000000e+00 : f32
      %86 = vector.broadcast %cst_46 : f32 to vector<8x128xf32>
      %c0_47 = arith.constant 0 : index
      %c0_48 = arith.constant 0 : index
      %87 = vector.load %arg4[%c0_47, %c0_48] : memref<8x128xf32, #tpu.memory_space<vmem>>, vector<8x128xf32>
      tpu.vector_store %arg4[%c0_47, %c0_48], %86 {strides = array<i32>} : memref<8x128xf32, #tpu.memory_space<vmem>>, vector<8x128xf32>,
    } else {
    }
    %c0 = arith.constant 0 : index
    %c0_1 = arith.constant 0 : index
    %3 = vector.load %arg2[%c0, %c0_1] : memref<128x128xf32, #tpu.memory_space<vmem>>, vector<128x128xf32>
    %c0_2 = arith.constant 0 : index
    %c0_3 = arith.constant 0 : index
    %4 = vector.load %arg4[%c0_2, %c0_3] : memref<8x128xf32, #tpu.memory_space<vmem>>, vector<8x128xf32>
    %c0_i32_4 = arith.constant 0 : i32
    %5 = arith.index_cast %c0_i32_4 : i32 to index
    %c0_5 = arith.constant 0 : index
    %c0_6 = arith.constant 0 : index
    %6 = vector.load %arg1[%5, %c0_5, %c0_6] : memref<8x8x128xf32, #tpu.memory_space<vmem>>, vector<1x8x128xf32>
    %7 = vector.shape_cast %6 : vector<1x8x128xf32> to vector<8x128xf32>
    %cst = arith.constant dense<0.000000e+00> : vector<8x128xf32>
    %8 = tpu.matmul %4, %3, %cst {dimension_numbers = #tpu.dot_dimension_numbers<[1], [0], [0], [1], [0, 0, 1, 1], [], []>} : vector<8x128xf32>, vector<128x128xf32>, vector<8x128xf32> -> vector<8x128xf32>
    %9 = arith.addf %7, %8 : vector<8x128xf32>
    %10 = math.tanh %9 : vector<8x128xf32>
    %11 = arith.index_cast %c0_i32_4 : i32 to index
    %c0_7 = arith.constant 0 : index
    %c0_8 = arith.constant 0 : index
    %12 = vector.load %arg3[%11, %c0_7, %c0_8] : memref<8x8x128xf32, #tpu.memory_space<vmem>>, vector<1x8x128xf32>
    %13 = vector.shape_cast %12 : vector<1x8x128xf32> to vector<8x128xf32>
    %14 = vector.shape_cast %10 : vector<8x128xf32> to vector<1x8x128xf32>
    tpu.vector_store %arg3[%11, %c0_7, %c0_8], %14 {strides = array<i32>} : memref<8x8x128xf32, #tpu.memory_space<vmem>>, vector<1x8x128xf32>,
    %c1_i32 = arith.constant 1 : i32
    %15 = arith.index_cast %c1_i32 : i32 to index
    %c0_9 = arith.constant 0 : index
    %c0_10 = arith.constant 0 : index
    %16 = vector.load %arg1[%15, %c0_9, %c0_10] : memref<8x8x128xf32, #tpu.memory_space<vmem>>, vector<1x8x128xf32>
    %17 = vector.shape_cast %16 : vector<1x8x128xf32> to vector<8x128xf32>
    %cst_11 = arith.constant dense<0.000000e+00> : vector<8x128xf32>
    %18 = tpu.matmul %10, %3, %cst_11 {dimension_numbers = #tpu.dot_dimension_numbers<[1], [0], [0], [1], [0, 0, 1, 1], [], []>} : vector<8x128xf32>, vector<128x128xf32>, vector<8x128xf32> -> vector<8x128xf32>
    %19 = arith.addf %17, %18 : vector<8x128xf32>
    %20 = math.tanh %19 : vector<8x128xf32>
    %21 = arith.index_cast %c1_i32 : i32 to index
    %c0_12 = arith.constant 0 : index
    %c0_13 = arith.constant 0 : index
    %22 = vector.load %arg3[%21, %c0_12, %c0_13] : memref<8x8x128xf32, #tpu.memory_space<vmem>>, vector<1x8x128xf32>
    %23 = vector.shape_cast %22 : vector<1x8x128xf32> to vector<8x128xf32>
    %24 = vector.shape_cast %20 : vector<8x128xf32> to vector<1x8x128xf32>
    tpu.vector_store %arg3[%21, %c0_12, %c0_13], %24 {strides = array<i32>} : memref<8x8x128xf32, #tpu.memory_space<vmem>>, vector<1x8x128xf32>,
    %c2_i32 = arith.constant 2 : i32
    %25 = arith.index_cast %c2_i32 : i32 to index
    %c0_14 = arith.constant 0 : index
    %c0_15 = arith.constant 0 : index
    %26 = vector.load %arg1[%25, %c0_14, %c0_15] : memref<8x8x128xf32, #tpu.memory_space<vmem>>, vector<1x8x128xf32>
    %27 = vector.shape_cast %26 : vector<1x8x128xf32> to vector<8x128xf32>
    %cst_16 = arith.constant dense<0.000000e+00> : vector<8x128xf32>
    %28 = tpu.matmul %20, %3, %cst_16 {dimension_numbers = #tpu.dot_dimension_numbers<[1], [0], [0], [1], [0, 0, 1, 1], [], []>} : vector<8x128xf32>, vector<128x128xf32>, vector<8x128xf32> -> vector<8x128xf32>
    %29 = arith.addf %27, %28 : vector<8x128xf32>
    %30 = math.tanh %29 : vector<8x128xf32>
    %31 = arith.index_cast %c2_i32 : i32 to index
    %c0_17 = arith.constant 0 : index
    %c0_18 = arith.constant 0 : index
    %32 = vector.load %arg3[%31, %c0_17, %c0_18] : memref<8x8x128xf32, #tpu.memory_space<vmem>>, vector<1x8x128xf32>
    %33 = vector.shape_cast %32 : vector<1x8x128xf32> to vector<8x128xf32>
    %34 = vector.shape_cast %30 : vector<8x128xf32> to vector<1x8x128xf32>
    tpu.vector_store %arg3[%31, %c0_17, %c0_18], %34 {strides = array<i32>} : memref<8x8x128xf32, #tpu.memory_space<vmem>>, vector<1x8x128xf32>,
    %c3_i32 = arith.constant 3 : i32
    %35 = arith.index_cast %c3_i32 : i32 to index
    %c0_19 = arith.constant 0 : index
    %c0_20 = arith.constant 0 : index
    %36 = vector.load %arg1[%35, %c0_19, %c0_20] : memref<8x8x128xf32, #tpu.memory_space<vmem>>, vector<1x8x128xf32>
    %37 = vector.shape_cast %36 : vector<1x8x128xf32> to vector<8x128xf32>
    %cst_21 = arith.constant dense<0.000000e+00> : vector<8x128xf32>
    %38 = tpu.matmul %30, %3, %cst_21 {dimension_numbers = #tpu.dot_dimension_numbers<[1], [0], [0], [1], [0, 0, 1, 1], [], []>} : vector<8x128xf32>, vector<128x128xf32>, vector<8x128xf32> -> vector<8x128xf32>
    %39 = arith.addf %37, %38 : vector<8x128xf32>
    %40 = math.tanh %39 : vector<8x128xf32>
    %41 = arith.index_cast %c3_i32 : i32 to index
    %c0_22 = arith.constant 0 : index
    %c0_23 = arith.constant 0 : index
    %42 = vector.load %arg3[%41, %c0_22, %c0_23] : memref<8x8x128xf32, #tpu.memory_space<vmem>>, vector<1x8x128xf32>
    %43 = vector.shape_cast %42 : vector<1x8x128xf32> to vector<8x128xf32>
    %44 = vector.shape_cast %40 : vector<8x128xf32> to vector<1x8x128xf32>
    tpu.vector_store %arg3[%41, %c0_22, %c0_23], %44 {strides = array<i32>} : memref<8x8x128xf32, #tpu.memory_space<vmem>>, vector<1x8x128xf32>,
    %c4_i32 = arith.constant 4 : i32
    %45 = arith.index_cast %c4_i32 : i32 to index
    %c0_24 = arith.constant 0 : index
    %c0_25 = arith.constant 0 : index
    %46 = vector.load %arg1[%45, %c0_24, %c0_25] : memref<8x8x128xf32, #tpu.memory_space<vmem>>, vector<1x8x128xf32>
    %47 = vector.shape_cast %46 : vector<1x8x128xf32> to vector<8x128xf32>
    %cst_26 = arith.constant dense<0.000000e+00> : vector<8x128xf32>
    %48 = tpu.matmul %40, %3, %cst_26 {dimension_numbers = #tpu.dot_dimension_numbers<[1], [0], [0], [1], [0, 0, 1, 1], [], []>} : vector<8x128xf32>, vector<128x128xf32>, vector<8x128xf32> -> vector<8x128xf32>
    %49 = arith.addf %47, %48 : vector<8x128xf32>
    %50 = math.tanh %49 : vector<8x128xf32>
    %51 = arith.index_cast %c4_i32 : i32 to index
    %c0_27 = arith.constant 0 : index
    %c0_28 = arith.constant 0 : index
    %52 = vector.load %arg3[%51, %c0_27, %c0_28] : memref<8x8x128xf32, #tpu.memory_space<vmem>>, vector<1x8x128xf32>
    %53 = vector.shape_cast %52 : vector<1x8x128xf32> to vector<8x128xf32>
    %54 = vector.shape_cast %50 : vector<8x128xf32> to vector<1x8x128xf32>
    tpu.vector_store %arg3[%51, %c0_27, %c0_28], %54 {strides = array<i32>} : memref<8x8x128xf32, #tpu.memory_space<vmem>>, vector<1x8x128xf32>,
    %c5_i32 = arith.constant 5 : i32
    %55 = arith.index_cast %c5_i32 : i32 to index
    %c0_29 = arith.constant 0 : index
    %c0_30 = arith.constant 0 : index
    %56 = vector.load %arg1[%55, %c0_29, %c0_30] : memref<8x8x128xf32, #tpu.memory_space<vmem>>, vector<1x8x128xf32>
    %57 = vector.shape_cast %56 : vector<1x8x128xf32> to vector<8x128xf32>
    %cst_31 = arith.constant dense<0.000000e+00> : vector<8x128xf32>
    %58 = tpu.matmul %50, %3, %cst_31 {dimension_numbers = #tpu.dot_dimension_numbers<[1], [0], [0], [1], [0, 0, 1, 1], [], []>} : vector<8x128xf32>, vector<128x128xf32>, vector<8x128xf32> -> vector<8x128xf32>
    %59 = arith.addf %57, %58 : vector<8x128xf32>
    %60 = math.tanh %59 : vector<8x128xf32>
    %61 = arith.index_cast %c5_i32 : i32 to index
    %c0_32 = arith.constant 0 : index
    %c0_33 = arith.constant 0 : index
    %62 = vector.load %arg3[%61, %c0_32, %c0_33] : memref<8x8x128xf32, #tpu.memory_space<vmem>>, vector<1x8x128xf32>
    %63 = vector.shape_cast %62 : vector<1x8x128xf32> to vector<8x128xf32>
    %64 = vector.shape_cast %60 : vector<8x128xf32> to vector<1x8x128xf32>
    tpu.vector_store %arg3[%61, %c0_32, %c0_33], %64 {strides = array<i32>} : memref<8x8x128xf32, #tpu.memory_space<vmem>>, vector<1x8x128xf32>,
    %c6_i32 = arith.constant 6 : i32
    %65 = arith.index_cast %c6_i32 : i32 to index
    %c0_34 = arith.constant 0 : index
    %c0_35 = arith.constant 0 : index
    %66 = vector.load %arg1[%65, %c0_34, %c0_35] : memref<8x8x128xf32, #tpu.memory_space<vmem>>, vector<1x8x128xf32>
    %67 = vector.shape_cast %66 : vector<1x8x128xf32> to vector<8x128xf32>
    %cst_36 = arith.constant dense<0.000000e+00> : vector<8x128xf32>
    %68 = tpu.matmul %60, %3, %cst_36 {dimension_numbers = #tpu.dot_dimension_numbers<[1], [0], [0], [1], [0, 0, 1, 1], [], []>} : vector<8x128xf32>, vector<128x128xf32>, vector<8x128xf32> -> vector<8x128xf32>
    %69 = arith.addf %67, %68 : vector<8x128xf32>
    %70 = math.tanh %69 : vector<8x128xf32>
    %71 = arith.index_cast %c6_i32 : i32 to index
    %c0_37 = arith.constant 0 : index
    %c0_38 = arith.constant 0 : index
    %72 = vector.load %arg3[%71, %c0_37, %c0_38] : memref<8x8x128xf32, #tpu.memory_space<vmem>>, vector<1x8x128xf32>
    %73 = vector.shape_cast %72 : vector<1x8x128xf32> to vector<8x128xf32>
    %74 = vector.shape_cast %70 : vector<8x128xf32> to vector<1x8x128xf32>
    tpu.vector_store %arg3[%71, %c0_37, %c0_38], %74 {strides = array<i32>} : memref<8x8x128xf32, #tpu.memory_space<vmem>>, vector<1x8x128xf32>,
    %c7_i32 = arith.constant 7 : i32
    %75 = arith.index_cast %c7_i32 : i32 to index
    %c0_39 = arith.constant 0 : index
    %c0_40 = arith.constant 0 : index
    %76 = vector.load %arg1[%75, %c0_39, %c0_40] : memref<8x8x128xf32, #tpu.memory_space<vmem>>, vector<1x8x128xf32>
    %77 = vector.shape_cast %76 : vector<1x8x128xf32> to vector<8x128xf32>
    %cst_41 = arith.constant dense<0.000000e+00> : vector<8x128xf32>
    %78 = tpu.matmul %70, %3, %cst_41 {dimension_numbers = #tpu.dot_dimension_numbers<[1], [0], [0], [1], [0, 0, 1, 1], [], []>} : vector<8x128xf32>, vector<128x128xf32>, vector<8x128xf32> -> vector<8x128xf32>
    %79 = arith.addf %77, %78 : vector<8x128xf32>
    %80 = math.tanh %79 : vector<8x128xf32>
    %81 = arith.index_cast %c7_i32 : i32 to index
    %c0_42 = arith.constant 0 : index
    %c0_43 = arith.constant 0 : index
    %82 = vector.load %arg3[%81, %c0_42, %c0_43] : memref<8x8x128xf32, #tpu.memory_space<vmem>>, vector<1x8x128xf32>
    %83 = vector.shape_cast %82 : vector<1x8x128xf32> to vector<8x128xf32>
    %84 = vector.shape_cast %80 : vector<8x128xf32> to vector<1x8x128xf32>
    tpu.vector_store %arg3[%81, %c0_42, %c0_43], %84 {strides = array<i32>} : memref<8x8x128xf32, #tpu.memory_space<vmem>>, vector<1x8x128xf32>,
    %c8_i32 = arith.constant 8 : i32
    %c0_44 = arith.constant 0 : index
    %c0_45 = arith.constant 0 : index
    %85 = vector.load %arg4[%c0_44, %c0_45] : memref<8x128xf32, #tpu.memory_space<vmem>>, vector<8x128xf32>
    tpu.vector_store %arg4[%c0_44, %c0_45], %80 {strides = array<i32>} : memref<8x128xf32, #tpu.memory_space<vmem>>, vector<8x128xf32>,
    return
  }
  func.func @transform_0(%arg0: i32) -> (i32, i32, i32) {
    %c0_i32 = arith.constant 0 : i32
    %c0_i32_0 = arith.constant 0 : i32
    %c0_i32_1 = arith.constant 0 : i32
    return %arg0, %c0_i32, %c0_i32_0 : i32, i32, i32
  }
  func.func @transform_1(%arg0: i32) -> (i32, i32) {
    %c0_i32 = arith.constant 0 : i32
    %c0_i32_0 = arith.constant 0 : i32
    %c0_i32_1 = arith.constant 0 : i32
    return %c0_i32, %c0_i32_0 : i32, i32
  }
  func.func @transform_2(%arg0: i32) -> (i32, i32, i32) {
    %c0_i32 = arith.constant 0 : i32
    %c0_i32_0 = arith.constant 0 : i32
    %c0_i32_1 = arith.constant 0 : i32
    return %arg0, %c0_i32, %c0_i32_0 : i32, i32, i32
  }
}

module attributes {stable_mosaic.version = 11 : i64} {
  func.func @_linear_kernel(%arg0: i32, %arg1: i32, %arg2: i32, %arg3: memref<32x128xf32, #tpu.memory_space<vmem>>, %arg4: memref<128x256xf32, #tpu.memory_space<vmem>>, %arg5: memref<1x256xf32, #tpu.memory_space<vmem>>, %arg6: memref<32x256xf32, #tpu.memory_space<vmem>>, %arg7: memref<32x256xf32, #tpu.memory_space<vmem>>) attributes {dimension_semantics = [#tpu.dimension_semantics<parallel>, #tpu.dimension_semantics<parallel>, #tpu.dimension_semantics<arbitrary>], iteration_bounds = array<i64: 1, 1, 1>, scalar_prefetch = 0 : i64, scratch_operands = 1 : i64, tpu.core_type = #tpu.core_type<tc>, window_params = [{transform_indices = @transform_0, window_bounds = array<i64: 32, 128>}, {transform_indices = @transform_1, window_bounds = array<i64: 128, 256>}, {transform_indices = @transform_2, window_bounds = array<i64: 1, 256>}, {transform_indices = @transform_3, window_bounds = array<i64: 32, 256>}]} {
    %c0_i32 = arith.constant 0 : i32
    %0 = arith.cmpi eq, %arg2, %c0_i32 : i32
    %1 = arith.extui %0 : i1 to i32
    %c0_i32_0 = arith.constant 0 : i32
    %2 = arith.cmpi ne, %1, %c0_i32_0 : i32
    scf.if %2 {
      %cst_10 = arith.constant 0.000000e+00 : f32
      %12 = vector.broadcast %cst_10 : f32 to vector<32x256xf32>
      %c0_11 = arith.constant 0 : index
      %c0_12 = arith.constant 0 : index
      %13 = vector.load %arg7[%c0_11, %c0_12] : memref<32x256xf32, #tpu.memory_space<vmem>>, vector<32x256xf32>
      tpu.vector_store %arg7[%c0_11, %c0_12], %12 {strides = array<i32>} : memref<32x256xf32, #tpu.memory_space<vmem>>, vector<32x256xf32>,
    } else {
    }
    %c0 = arith.constant 0 : index
    %c0_1 = arith.constant 0 : index
    %3 = vector.load %arg7[%c0, %c0_1] : memref<32x256xf32, #tpu.memory_space<vmem>>, vector<32x256xf32>
    %c0_2 = arith.constant 0 : index
    %c0_3 = arith.constant 0 : index
    %4 = vector.load %arg3[%c0_2, %c0_3] : memref<32x128xf32, #tpu.memory_space<vmem>>, vector<32x128xf32>
    %c0_4 = arith.constant 0 : index
    %c0_5 = arith.constant 0 : index
    %5 = vector.load %arg4[%c0_4, %c0_5] : memref<128x256xf32, #tpu.memory_space<vmem>>, vector<128x256xf32>
    %cst = arith.constant dense<0.000000e+00> : vector<32x256xf32>
    %6 = tpu.matmul %4, %5, %cst {dimension_numbers = #tpu.dot_dimension_numbers<[1], [0], [0], [1], [0, 0, 1, 1], [], []>} : vector<32x128xf32>, vector<128x256xf32>, vector<32x256xf32> -> vector<32x256xf32>
    %7 = arith.addf %3, %6 : vector<32x256xf32>
    %c0_6 = arith.constant 0 : index
    %c0_7 = arith.constant 0 : index
    %8 = vector.load %arg7[%c0_6, %c0_7] : memref<32x256xf32, #tpu.memory_space<vmem>>, vector<32x256xf32>
    tpu.vector_store %arg7[%c0_6, %c0_7], %7 {strides = array<i32>} : memref<32x256xf32, #tpu.memory_space<vmem>>, vector<32x256xf32>,
    %c0_i32_8 = arith.constant 0 : i32
    %9 = arith.cmpi eq, %arg2, %c0_i32_8 : i32
    %10 = arith.extui %9 : i1 to i32
    %c0_i32_9 = arith.constant 0 : i32
    %11 = arith.cmpi ne, %10, %c0_i32_9 : i32
    scf.if %11 {
      %c0_10 = arith.constant 0 : index
      %c0_11 = arith.constant 0 : index
      %12 = vector.load %arg7[%c0_10, %c0_11] : memref<32x256xf32, #tpu.memory_space<vmem>>, vector<32x256xf32>
      %c0_12 = arith.constant 0 : index
      %c0_13 = arith.constant 0 : index
      %13 = vector.load %arg5[%c0_12, %c0_13] : memref<1x256xf32, #tpu.memory_space<vmem>>, vector<1x256xf32>
      %14 = vector.broadcast %13 : vector<1x256xf32> to vector<32x256xf32>
      %15 = arith.addf %12, %14 : vector<32x256xf32>
      %c0_14 = arith.constant 0 : index
      %c0_15 = arith.constant 0 : index
      %16 = vector.load %arg6[%c0_14, %c0_15] : memref<32x256xf32, #tpu.memory_space<vmem>>, vector<32x256xf32>
      tpu.vector_store %arg6[%c0_14, %c0_15], %15 {strides = array<i32>} : memref<32x256xf32, #tpu.memory_space<vmem>>, vector<32x256xf32>,
    } else {
    }
    return
  }
  func.func @transform_0(%arg0: i32, %arg1: i32, %arg2: i32) -> (i32, i32) {
    %c0_i32 = arith.constant 0 : i32
    return %arg0, %arg2 : i32, i32
  }
  func.func @transform_1(%arg0: i32, %arg1: i32, %arg2: i32) -> (i32, i32) {
    %c0_i32 = arith.constant 0 : i32
    return %arg2, %arg1 : i32, i32
  }
  func.func @transform_2(%arg0: i32, %arg1: i32, %arg2: i32) -> (i32, i32) {
    %c0_i32 = arith.constant 0 : i32
    %c0_i32_0 = arith.constant 0 : i32
    return %c0_i32, %arg1 : i32, i32
  }
  func.func @transform_3(%arg0: i32, %arg1: i32, %arg2: i32) -> (i32, i32) {
    %c0_i32 = arith.constant 0 : i32
    return %arg0, %arg1 : i32, i32
  }
}

</mosaic_0001>

<llo_original>
// kernel: rnn_language_model_forward.3
$region0: #{rnn_language_model_forward.3}
  #allocation0 [shape = 'u32[]', space=smem, size = 0x4, offset = 0x4, fixed_abs, tag = 'smem constant byte address 0x4 - core index']
  #allocation1 [shape = 'u32[72,128]{1,0:T(1,128)}', space=vmem, size = 0x9000, scoped, tag = 'internal scratch']
  #allocation2 [shape = 'f32[32,128]{1,0:T(8,128)}', space=vmem, size = 0x4000, scoped, tag = 'scratch operand']
  %s0 = inlined_call_operand.vmem [shape: f32[32,32], index: 0, kind: input, shape index: {}]
  %s1 = inlined_call_operand.vmem [shape: f32[32,128], index: 1, kind: input, shape index: {}]
  %s2 = inlined_call_operand.vmem [shape: f32[1,128], index: 2, kind: input, shape index: {}]
  %s3 = inlined_call_operand.vmem [shape: f32[32,128], index: 3, kind: output, shape index: {}]
  %s4 = sld [smem:[#allocation0]]
  $region30: #{rnn_language_model_forward.3} parent=0
    _
  %s6 = ssub.s32 1, %s4
  %s7 = scalar_select 0, %s6, %s4
  // Predicated region
  $region2: #{rnn_language_model_forward.3} parent=0 // pred_check
    _
  $region3: #{rnn_language_model_forward.3} parent=0 // pred_check_branch
    %9 = sbr.rel (0) target = $region5
  $region4: #{rnn_language_model_forward.3} parent=0 // pred_region
    _
  $region5: #{rnn_language_model_forward.3} parent=0 // pred_fallthru
    _
  // Predicated region
  $region6: #{rnn_language_model_forward.3} parent=0 // pred_check
    _
  $region7: #{rnn_language_model_forward.3} parent=0 // pred_check_branch
    %11 = sbr.rel (0) target = $region9
  $region8: #{rnn_language_model_forward.3} parent=0 // pred_region
    _
  $region9: #{rnn_language_model_forward.3} parent=0 // pred_fallthru
    _
  // Predicated region
  $region10: #{rnn_language_model_forward.3} parent=0 // pred_check
    _
  $region11: #{rnn_language_model_forward.3} parent=0 // pred_check_branch
    %13 = sbr.rel (0) target = $region13
  $region12: #{rnn_language_model_forward.3} parent=0 // pred_region
    _
  $region13: #{rnn_language_model_forward.3} parent=0 // pred_fallthru
    _
  %p14 = scmp.eq.s32.totalorder 0, 0
  // Predicated region
  $region14: #{rnn_language_model_forward.3} parent=0 // pred_check
    %p15 = pneg %p14
  $region15: #{rnn_language_model_forward.3} parent=0 // pred_check_branch
    %17 = sbr.rel (%p15) target = $region17
  $region16: #{rnn_language_model_forward.3} parent=0 // pred_region
    %18 = vst [vmem:[#allocation2] sm:$0xff] 0.0
    %19 = vst [vmem:[#allocation2 + $0x8] sm:$0xff] 0.0
    %20 = vst [vmem:[#allocation2 + $0x10] sm:$0xff] 0.0
    %21 = vst [vmem:[#allocation2 + $0x18] sm:$0xff] 0.0
  $region17: #{rnn_language_model_forward.3} parent=0 // pred_fallthru
    _
  %v22 = vld [vmem:[#allocation2] sm:$0xff]
  %v23 = vld [vmem:[#allocation2 + $0x8] sm:$0xff]
  %v24 = vld [vmem:[#allocation2 + $0x10] sm:$0xff]
  %v25 = vld [vmem:[#allocation2 + $0x18] sm:$0xff]
  %v26 = vld [vmem:[%s0] sm:$0xff]
  %v27 = vld [vmem:[%s0 + $0x8] sm:$0xff]
  %v28 = vld [vmem:[%s0 + $0x10] sm:$0xff]
  %v29 = vld [vmem:[%s0 + $0x18] sm:$0xff]
  %v30 = vld [vmem:[%s1] sm:$0xff]
  %v31 = vld [vmem:[%s1 + $0x8] sm:$0xff]
  %v32 = vld [vmem:[%s1 + $0x10] sm:$0xff]
  %v33 = vld [vmem:[%s1 + $0x18] sm:$0xff]
  %vm34 = vcmask 261120
  %v36 = vsel %vm34, %v26, 0
  %v39 = vsel %vm34, %v27, 0
  %v42 = vsel %vm34, %v28, 0
  %v45 = vsel %vm34, %v29, 0
  %47 = vmatpush.msra.mxu0 0.0
  %48 = vmatpush.msra.mxu0 0.0
  %49 = vmatpush.msra.mxu0 0.0
  %50 = vmatpush.msra.mxu0 0.0
  %51 = vmatpush.msra.mxu0 0.0
  %52 = vmatpush.msra.mxu0 0.0
  %53 = vmatpush.msra.mxu0 0.0
  %54 = vmatpush.msra.mxu0 0.0
  %55 = vmatpush.msra.mxu0 0.0
  %56 = vmatpush.msra.mxu0 0.0
  %57 = vmatpush.msra.mxu0 0.0
  %58 = vmatpush.msra.mxu0 0.0
  %59 = vmatpush.msra.mxu0 %v33
  %60 = vmatpush.msra.mxu0 %v32
  %61 = vmatpush.msra.mxu0 %v31
  %62 = vmatpush.msra.mxu0 %v30
  %63 = vmatmul.f32.gmra.mxu0 %v36
  %v64 = vpop.f32.mrf.mxu0
  %v65 = vadd.f32 0.0, %v64
  %66 = vmatmul.f32.gmra.mxu0 %v39
  %v67 = vpop.f32.mrf.mxu0
  %v68 = vadd.f32 0.0, %v67
  %69 = vmatmul.f32.gmra.mxu0 %v42
  %v70 = vpop.f32.mrf.mxu0
  %v71 = vadd.f32 0.0, %v70
  %72 = vmatmul.f32.gmra.mxu0 %v45
  %v73 = vpop.f32.mrf.mxu0
  %v74 = vadd.f32 0.0, %v73
  %75 = vdwg.mxu0
  %v76 = vadd.f32 %v22, %v65
  %v77 = vadd.f32 %v23, %v68
  %v78 = vadd.f32 %v24, %v71
  %v79 = vadd.f32 %v25, %v74
  %80 = vst [vmem:[#allocation2] sm:$0xff] %v76
  %81 = vst [vmem:[#allocation2 + $0x8] sm:$0xff] %v77
  %82 = vst [vmem:[#allocation2 + $0x10] sm:$0xff] %v78
  %83 = vst [vmem:[#allocation2 + $0x18] sm:$0xff] %v79
  // Predicated region
  $region18: #{rnn_language_model_forward.3} parent=0 // pred_check
    %p84 = pneg %p14
  $region19: #{rnn_language_model_forward.3} parent=0 // pred_check_branch
    %86 = sbr.rel (%p84) target = $region21
  $region20: #{rnn_language_model_forward.3} parent=0 // pred_region
    %v87 = vld [vmem:[#allocation2] sm:$0xff]
    %v88 = vld [vmem:[#allocation2 + $0x8] sm:$0xff]
    %v89 = vld [vmem:[#allocation2 + $0x10] sm:$0xff]
    %v90 = vld [vmem:[#allocation2 + $0x18] sm:$0xff]
    %v91 = vld [vmem:[%s2] sm:$0x1]
    %v93 = vperm.slane %v91, 0
    %v95 = vadd.f32 %v87, %v93
    %v96 = vadd.f32 %v88, %v93
    %v97 = vadd.f32 %v89, %v93
    %v98 = vadd.f32 %v90, %v93
    %99 = vst [vmem:[%s3] sm:$0xff] %v95
    %100 = vst [vmem:[%s3 + $0x8] sm:$0xff] %v96
    %101 = vst [vmem:[%s3 + $0x10] sm:$0xff] %v97
    %102 = vst [vmem:[%s3 + $0x18] sm:$0xff] %v98
  $region21: #{rnn_language_model_forward.3} parent=0 // pred_fallthru
    _
  // Predicated region
  $region22: #{rnn_language_model_forward.3} parent=0 // pred_check
    _
  $region23: #{rnn_language_model_forward.3} parent=0 // pred_check_branch
    %104 = sbr.rel (0) target = $region25
  $region24: #{rnn_language_model_forward.3} parent=0 // pred_region
    _
  $region25: #{rnn_language_model_forward.3} parent=0 // pred_fallthru
    _
  // Predicated region
  $region26: #{rnn_language_model_forward.3} parent=0 // pred_check
    _
  $region27: #{rnn_language_model_forward.3} parent=0 // pred_check_branch
    %106 = sbr.rel (0) target = $region29
  $region28: #{rnn_language_model_forward.3} parent=0 // pred_region
    _
  $region29: #{rnn_language_model_forward.3} parent=0 // pred_fallthru
    _

// kernel: rnn_language_model_forward.4
$region0: #{rnn_language_model_forward.4}
  #allocation0 [shape = 'u32[]', space=smem, size = 0x4, offset = 0x4, fixed_abs, tag = 'smem constant byte address 0x4 - core index']
  #allocation1 [shape = 'u32[72,128]{1,0:T(1,128)}', space=vmem, size = 0x9000, scoped, tag = 'internal scratch']
  #allocation2 [shape = 'f32[8,128]{1,0:T(8,128)}', space=vmem, size = 0x1000, scoped, tag = 'scratch operand']
  %s0 = inlined_call_operand.vmem [shape: f32[8,8,128], index: 0, kind: input, shape index: {}]
  %s1 = inlined_call_operand.vmem [shape: f32[128,128], index: 1, kind: input, shape index: {}]
  %s2 = inlined_call_operand.vmem [shape: f32[8,8,128], index: 2, kind: output, shape index: {}]
  %s3 = sld [smem:[#allocation0]]
  $region22: #{rnn_language_model_forward.4} parent=0
    _
  %s5 = ssub.s32 1, %s3
  %s6 = scalar_select 0, %s5, %s3
  // Predicated region
  $region2: #{rnn_language_model_forward.4} parent=0 // pred_check
    _
  $region3: #{rnn_language_model_forward.4} parent=0 // pred_check_branch
    %8 = sbr.rel (0) target = $region5
  $region4: #{rnn_language_model_forward.4} parent=0 // pred_region
    _
  $region5: #{rnn_language_model_forward.4} parent=0 // pred_fallthru
    _
  // Predicated region
  $region6: #{rnn_language_model_forward.4} parent=0 // pred_check
    _
  $region7: #{rnn_language_model_forward.4} parent=0 // pred_check_branch
    %10 = sbr.rel (0) target = $region9
  $region8: #{rnn_language_model_forward.4} parent=0 // pred_region
    _
  $region9: #{rnn_language_model_forward.4} parent=0 // pred_fallthru
    _
  %p11 = scmp.eq.s32.totalorder 0, 0
  // Predicated region
  $region10: #{rnn_language_model_forward.4} parent=0 // pred_check
    %p12 = pneg %p11
  $region11: #{rnn_language_model_forward.4} parent=0 // pred_check_branch
    %14 = sbr.rel (%p12) target = $region13
  $region12: #{rnn_language_model_forward.4} parent=0 // pred_region
    %15 = vst [vmem:[#allocation2] sm:$0xff] 0.0
  $region13: #{rnn_language_model_forward.4} parent=0 // pred_fallthru
    _
  %v16 = vld [vmem:[%s1] sm:$0xff]
  %v17 = vld [vmem:[%s1 + $0x8] sm:$0xff]
  %v18 = vld [vmem:[%s1 + $0x10] sm:$0xff]
  %v19 = vld [vmem:[%s1 + $0x18] sm:$0xff]
  %v20 = vld [vmem:[%s1 + $0x20] sm:$0xff]
  %v21 = vld [vmem:[%s1 + $0x28] sm:$0xff]
  %v22 = vld [vmem:[%s1 + $0x30] sm:$0xff]
  %v23 = vld [vmem:[%s1 + $0x38] sm:$0xff]
  %v24 = vld [vmem:[%s1 + $0x40] sm:$0xff]
  %v25 = vld [vmem:[%s1 + $0x48] sm:$0xff]
  %v26 = vld [vmem:[%s1 + $0x50] sm:$0xff]
  %v27 = vld [vmem:[%s1 + $0x58] sm:$0xff]
  %v28 = vld [vmem:[%s1 + $0x60] sm:$0xff]
  %v29 = vld [vmem:[%s1 + $0x68] sm:$0xff]
  %v30 = vld [vmem:[%s1 + $0x70] sm:$0xff]
  %v31 = vld [vmem:[%s1 + $0x78] sm:$0xff]
  %v32 = vld [vmem:[#allocation2] sm:$0xff]
  %v33 = vld [vmem:[%s0] sm:$0xff]
  %34 = vmatpush.msra.mxu0 %v31
  %35 = vmatpush.msra.mxu0 %v30
  %36 = vmatpush.msra.mxu0 %v29
  %37 = vmatpush.msra.mxu0 %v28
  %38 = vmatpush.msra.mxu0 %v27
  %39 = vmatpush.msra.mxu0 %v26
  %40 = vmatpush.msra.mxu0 %v25
  %41 = vmatpush.msra.mxu0 %v24
  %42 = vmatpush.msra.mxu0 %v23
  %43 = vmatpush.msra.mxu0 %v22
  %44 = vmatpush.msra.mxu0 %v21
  %45 = vmatpush.msra.mxu0 %v20
  %46 = vmatpush.msra.mxu0 %v19
  %47 = vmatpush.msra.mxu0 %v18
  %48 = vmatpush.msra.mxu0 %v17
  %49 = vmatpush.msra.mxu0 %v16
  %50 = vmatmul.f32.gmra.mxu0 %v32
  %v51 = vpop.f32.mrf.mxu0
  %v52 = vadd.f32 0.0, %v51
  %53 = vdwg.mxu0
  %v54 = vadd.f32 %v33, %v52
  %v55 = vtanh.pop %v54
  %56 = vst [vmem:[%s2] sm:$0xff] %v55
  %s57 = scalar_lea.vmem %s0, 8
  %v58 = vld [vmem:[%s57] sm:$0xff]
  %59 = vmatpush.msra.mxu0 %v31
  %60 = vmatpush.msra.mxu0 %v30
  %61 = vmatpush.msra.mxu0 %v29
  %62 = vmatpush.msra.mxu0 %v28
  %63 = vmatpush.msra.mxu0 %v27
  %64 = vmatpush.msra.mxu0 %v26
  %65 = vmatpush.msra.mxu0 %v25
  %66 = vmatpush.msra.mxu0 %v24
  %67 = vmatpush.msra.mxu0 %v23
  %68 = vmatpush.msra.mxu0 %v22
  %69 = vmatpush.msra.mxu0 %v21
  %70 = vmatpush.msra.mxu0 %v20
  %71 = vmatpush.msra.mxu0 %v19
  %72 = vmatpush.msra.mxu0 %v18
  %73 = vmatpush.msra.mxu0 %v17
  %74 = vmatpush.msra.mxu0 %v16
  %75 = vmatmul.f32.gmra.mxu0 %v55
  %v76 = vpop.f32.mrf.mxu0
  %v77 = vadd.f32 0.0, %v76
  %78 = vdwg.mxu0
  %v79 = vadd.f32 %v58, %v77
  %v80 = vtanh.pop %v79
  %s81 = scalar_lea.vmem %s2, 8
  %82 = vst [vmem:[%s81] sm:$0xff] %v80
  %s83 = scalar_lea.vmem %s0, 16
  %v84 = vld [vmem:[%s83] sm:$0xff]
  %85 = vmatpush.msra.mxu0 %v31
  %86 = vmatpush.msra.mxu0 %v30
  %87 = vmatpush.msra.mxu0 %v29
  %88 = vmatpush.msra.mxu0 %v28
  %89 = vmatpush.msra.mxu0 %v27
  %90 = vmatpush.msra.mxu0 %v26
  %91 = vmatpush.msra.mxu0 %v25
  %92 = vmatpush.msra.mxu0 %v24
  %93 = vmatpush.msra.mxu0 %v23
  %94 = vmatpush.msra.mxu0 %v22
  %95 = vmatpush.msra.mxu0 %v21
  %96 = vmatpush.msra.mxu0 %v20
  %97 = vmatpush.msra.mxu0 %v19
  %98 = vmatpush.msra.mxu0 %v18
  %99 = vmatpush.msra.mxu0 %v17
  %100 = vmatpush.msra.mxu0 %v16
  %101 = vmatmul.f32.gmra.mxu0 %v80
  %v102 = vpop.f32.mrf.mxu0
  %v103 = vadd.f32 0.0, %v102
  %104 = vdwg.mxu0
  %v105 = vadd.f32 %v84, %v103
  %v106 = vtanh.pop %v105
  %s107 = scalar_lea.vmem %s2, 16
  %108 = vst [vmem:[%s107] sm:$0xff] %v106
  %s109 = scalar_lea.vmem %s0, 24
  %v110 = vld [vmem:[%s109] sm:$0xff]
  %111 = vmatpush.msra.mxu0 %v31
  %112 = vmatpush.msra.mxu0 %v30
  %113 = vmatpush.msra.mxu0 %v29
  %114 = vmatpush.msra.mxu0 %v28
  %115 = vmatpush.msra.mxu0 %v27
  %116 = vmatpush.msra.mxu0 %v26
  %117 = vmatpush.msra.mxu0 %v25
  %118 = vmatpush.msra.mxu0 %v24
  %119 = vmatpush.msra.mxu0 %v23
  %120 = vmatpush.msra.mxu0 %v22
  %121 = vmatpush.msra.mxu0 %v21
  %122 = vmatpush.msra.mxu0 %v20
  %123 = vmatpush.msra.mxu0 %v19
  %124 = vmatpush.msra.mxu0 %v18
  %125 = vmatpush.msra.mxu0 %v17
  %126 = vmatpush.msra.mxu0 %v16
  %127 = vmatmul.f32.gmra.mxu0 %v106
  %v128 = vpop.f32.mrf.mxu0
  %v129 = vadd.f32 0.0, %v128
  %130 = vdwg.mxu0
  %v131 = vadd.f32 %v110, %v129
  %v132 = vtanh.pop %v131
  %s133 = scalar_lea.vmem %s2, 24
  %134 = vst [vmem:[%s133] sm:$0xff] %v132
  %s135 = scalar_lea.vmem %s0, 32
  %v136 = vld [vmem:[%s135] sm:$0xff]
  %137 = vmatpush.msra.mxu0 %v31
  %138 = vmatpush.msra.mxu0 %v30
  %139 = vmatpush.msra.mxu0 %v29
  %140 = vmatpush.msra.mxu0 %v28
  %141 = vmatpush.msra.mxu0 %v27
  %142 = vmatpush.msra.mxu0 %v26
  %143 = vmatpush.msra.mxu0 %v25
  %144 = vmatpush.msra.mxu0 %v24
  %145 = vmatpush.msra.mxu0 %v23
  %146 = vmatpush.msra.mxu0 %v22
  %147 = vmatpush.msra.mxu0 %v21
  %148 = vmatpush.msra.mxu0 %v20
  %149 = vmatpush.msra.mxu0 %v19
  %150 = vmatpush.msra.mxu0 %v18
  %151 = vmatpush.msra.mxu0 %v17
  %152 = vmatpush.msra.mxu0 %v16
  %153 = vmatmul.f32.gmra.mxu0 %v132
  %v154 = vpop.f32.mrf.mxu0
  %v155 = vadd.f32 0.0, %v154
  %156 = vdwg.mxu0
  %v157 = vadd.f32 %v136, %v155
  %v158 = vtanh.pop %v157
  %s159 = scalar_lea.vmem %s2, 32
  %160 = vst [vmem:[%s159] sm:$0xff] %v158
  %s161 = scalar_lea.vmem %s0, 40
  %v162 = vld [vmem:[%s161] sm:$0xff]
  %163 = vmatpush.msra.mxu0 %v31
  %164 = vmatpush.msra.mxu0 %v30
  %165 = vmatpush.msra.mxu0 %v29
  %166 = vmatpush.msra.mxu0 %v28
  %167 = vmatpush.msra.mxu0 %v27
  %168 = vmatpush.msra.mxu0 %v26
  %169 = vmatpush.msra.mxu0 %v25
  %170 = vmatpush.msra.mxu0 %v24
  %171 = vmatpush.msra.mxu0 %v23
  %172 = vmatpush.msra.mxu0 %v22
  %173 = vmatpush.msra.mxu0 %v21
  %174 = vmatpush.msra.mxu0 %v20
  %175 = vmatpush.msra.mxu0 %v19
  %176 = vmatpush.msra.mxu0 %v18
  %177 = vmatpush.msra.mxu0 %v17
  %178 = vmatpush.msra.mxu0 %v16
  %179 = vmatmul.f32.gmra.mxu0 %v158
  %v180 = vpop.f32.mrf.mxu0
  %v181 = vadd.f32 0.0, %v180
  %182 = vdwg.mxu0
  %v183 = vadd.f32 %v162, %v181
  %v184 = vtanh.pop %v183
  %s185 = scalar_lea.vmem %s2, 40
  %186 = vst [vmem:[%s185] sm:$0xff] %v184
  %s187 = scalar_lea.vmem %s0, 48
  %v188 = vld [vmem:[%s187] sm:$0xff]
  %189 = vmatpush.msra.mxu0 %v31
  %190 = vmatpush.msra.mxu0 %v30
  %191 = vmatpush.msra.mxu0 %v29
  %192 = vmatpush.msra.mxu0 %v28
  %193 = vmatpush.msra.mxu0 %v27
  %194 = vmatpush.msra.mxu0 %v26
  %195 = vmatpush.msra.mxu0 %v25
  %196 = vmatpush.msra.mxu0 %v24
  %197 = vmatpush.msra.mxu0 %v23
  %198 = vmatpush.msra.mxu0 %v22
  %199 = vmatpush.msra.mxu0 %v21
  %200 = vmatpush.msra.mxu0 %v20
  %201 = vmatpush.msra.mxu0 %v19
  %202 = vmatpush.msra.mxu0 %v18
  %203 = vmatpush.msra.mxu0 %v17
  %204 = vmatpush.msra.mxu0 %v16
  %205 = vmatmul.f32.gmra.mxu0 %v184
  %v206 = vpop.f32.mrf.mxu0
  %v207 = vadd.f32 0.0, %v206
  %208 = vdwg.mxu0
  %v209 = vadd.f32 %v188, %v207
  %v210 = vtanh.pop %v209
  %s211 = scalar_lea.vmem %s2, 48
  %212 = vst [vmem:[%s211] sm:$0xff] %v210
  %s213 = scalar_lea.vmem %s0, 56
  %v214 = vld [vmem:[%s213] sm:$0xff]
  %215 = vmatpush.msra.mxu0 %v31
  %216 = vmatpush.msra.mxu0 %v30
  %217 = vmatpush.msra.mxu0 %v29
  %218 = vmatpush.msra.mxu0 %v28
  %219 = vmatpush.msra.mxu0 %v27
  %220 = vmatpush.msra.mxu0 %v26
  %221 = vmatpush.msra.mxu0 %v25
  %222 = vmatpush.msra.mxu0 %v24
  %223 = vmatpush.msra.mxu0 %v23
  %224 = vmatpush.msra.mxu0 %v22
  %225 = vmatpush.msra.mxu0 %v21
  %226 = vmatpush.msra.mxu0 %v20
  %227 = vmatpush.msra.mxu0 %v19
  %228 = vmatpush.msra.mxu0 %v18
  %229 = vmatpush.msra.mxu0 %v17
  %230 = vmatpush.msra.mxu0 %v16
  %231 = vmatmul.f32.gmra.mxu0 %v210
  %v232 = vpop.f32.mrf.mxu0
  %v233 = vadd.f32 0.0, %v232
  %234 = vdwg.mxu0
  %v235 = vadd.f32 %v214, %v233
  %v236 = vtanh.pop %v235
  %s237 = scalar_lea.vmem %s2, 56
  %238 = vst [vmem:[%s237] sm:$0xff] %v236
  %239 = vst [vmem:[#allocation2] sm:$0xff] %v236
  // Predicated region
  $region14: #{rnn_language_model_forward.4} parent=0 // pred_check
    _
  $region15: #{rnn_language_model_forward.4} parent=0 // pred_check_branch
    %241 = sbr.rel (0) target = $region17
  $region16: #{rnn_language_model_forward.4} parent=0 // pred_region
    _
  $region17: #{rnn_language_model_forward.4} parent=0 // pred_fallthru
    _
  // Predicated region
  $region18: #{rnn_language_model_forward.4} parent=0 // pred_check
    _
  $region19: #{rnn_language_model_forward.4} parent=0 // pred_check_branch
    %243 = sbr.rel (0) target = $region21
  $region20: #{rnn_language_model_forward.4} parent=0 // pred_region
    _
  $region21: #{rnn_language_model_forward.4} parent=0 // pred_fallthru
    _

// kernel: rnn_language_model_forward.5
$region0: #{rnn_language_model_forward.5}
  #allocation0 [shape = 'u32[]', space=smem, size = 0x4, offset = 0x4, fixed_abs, tag = 'smem constant byte address 0x4 - core index']
  #allocation1 [shape = 'u32[72,128]{1,0:T(1,128)}', space=vmem, size = 0x9000, scoped, tag = 'internal scratch']
  #allocation2 [shape = 'f32[32,256]{1,0:T(8,128)}', space=vmem, size = 0x8000, scoped, tag = 'scratch operand']
  %s0 = inlined_call_operand.vmem [shape: f32[32,128], index: 0, kind: input, shape index: {}]
  %s1 = inlined_call_operand.vmem [shape: f32[128,256], index: 1, kind: input, shape index: {}]
  %s2 = inlined_call_operand.vmem [shape: f32[1,256], index: 2, kind: input, shape index: {}]
  %s3 = inlined_call_operand.vmem [shape: f32[32,256], index: 3, kind: output, shape index: {}]
  %s4 = sld [smem:[#allocation0]]
  $region30: #{rnn_language_model_forward.5} parent=0
    _
  %s6 = ssub.s32 1, %s4
  %s7 = scalar_select 0, %s6, %s4
  // Predicated region
  $region2: #{rnn_language_model_forward.5} parent=0 // pred_check
    _
  $region3: #{rnn_language_model_forward.5} parent=0 // pred_check_branch
    %9 = sbr.rel (0) target = $region5
  $region4: #{rnn_language_model_forward.5} parent=0 // pred_region
    _
  $region5: #{rnn_language_model_forward.5} parent=0 // pred_fallthru
    _
  // Predicated region
  $region6: #{rnn_language_model_forward.5} parent=0 // pred_check
    _
  $region7: #{rnn_language_model_forward.5} parent=0 // pred_check_branch
    %11 = sbr.rel (0) target = $region9
  $region8: #{rnn_language_model_forward.5} parent=0 // pred_region
    _
  $region9: #{rnn_language_model_forward.5} parent=0 // pred_fallthru
    _
  // Predicated region
  $region10: #{rnn_language_model_forward.5} parent=0 // pred_check
    _
  $region11: #{rnn_language_model_forward.5} parent=0 // pred_check_branch
    %13 = sbr.rel (0) target = $region13
  $region12: #{rnn_language_model_forward.5} parent=0 // pred_region
    _
  $region13: #{rnn_language_model_forward.5} parent=0 // pred_fallthru
    _
  %p14 = scmp.eq.s32.totalorder 0, 0
  // Predicated region
  $region14: #{rnn_language_model_forward.5} parent=0 // pred_check
    %p15 = pneg %p14
  $region15: #{rnn_language_model_forward.5} parent=0 // pred_check_branch
    %17 = sbr.rel (%p15) target = $region17
  $region16: #{rnn_language_model_forward.5} parent=0 // pred_region
    %18 = vst [vmem:[#allocation2] sm:$0xff] 0.0
    %19 = vst [vmem:[#allocation2 + $0x8] sm:$0xff] 0.0
    %20 = vst [vmem:[#allocation2 + $0x10] sm:$0xff] 0.0
    %21 = vst [vmem:[#allocation2 + $0x18] sm:$0xff] 0.0
    %22 = vst [vmem:[#allocation2 + $0x20] sm:$0xff] 0.0
    %23 = vst [vmem:[#allocation2 + $0x28] sm:$0xff] 0.0
    %24 = vst [vmem:[#allocation2 + $0x30] sm:$0xff] 0.0
    %25 = vst [vmem:[#allocation2 + $0x38] sm:$0xff] 0.0
  $region17: #{rnn_language_model_forward.5} parent=0 // pred_fallthru
    _
  %v26 = vld [vmem:[#allocation2] sm:$0xff]
  %v27 = vld [vmem:[#allocation2 + $0x8] sm:$0xff]
  %v28 = vld [vmem:[#allocation2 + $0x10] sm:$0xff]
  %v29 = vld [vmem:[#allocation2 + $0x18] sm:$0xff]
  %v30 = vld [vmem:[#allocation2 + $0x20] sm:$0xff]
  %v31 = vld [vmem:[#allocation2 + $0x28] sm:$0xff]
  %v32 = vld [vmem:[#allocation2 + $0x30] sm:$0xff]
  %v33 = vld [vmem:[#allocation2 + $0x38] sm:$0xff]
  %v34 = vld [vmem:[%s0] sm:$0xff]
  %v35 = vld [vmem:[%s0 + $0x8] sm:$0xff]
  %v36 = vld [vmem:[%s0 + $0x10] sm:$0xff]
  %v37 = vld [vmem:[%s0 + $0x18] sm:$0xff]
  %v38 = vld [vmem:[%s1] sm:$0xff]
  %v39 = vld [vmem:[%s1 + $0x8] sm:$0xff]
  %v40 = vld [vmem:[%s1 + $0x10] sm:$0xff]
  %v41 = vld [vmem:[%s1 + $0x18] sm:$0xff]
  %v42 = vld [vmem:[%s1 + $0x20] sm:$0xff]
  %v43 = vld [vmem:[%s1 + $0x28] sm:$0xff]
  %v44 = vld [vmem:[%s1 + $0x30] sm:$0xff]
  %v45 = vld [vmem:[%s1 + $0x38] sm:$0xff]
  %v46 = vld [vmem:[%s1 + $0x40] sm:$0xff]
  %v47 = vld [vmem:[%s1 + $0x48] sm:$0xff]
  %v48 = vld [vmem:[%s1 + $0x50] sm:$0xff]
  %v49 = vld [vmem:[%s1 + $0x58] sm:$0xff]
  %v50 = vld [vmem:[%s1 + $0x60] sm:$0xff]
  %v51 = vld [vmem:[%s1 + $0x68] sm:$0xff]
  %v52 = vld [vmem:[%s1 + $0x70] sm:$0xff]
  %v53 = vld [vmem:[%s1 + $0x78] sm:$0xff]
  %v54 = vld [vmem:[%s1 + $0x80] sm:$0xff]
  %v55 = vld [vmem:[%s1 + $0x88] sm:$0xff]
  %v56 = vld [vmem:[%s1 + $0x90] sm:$0xff]
  %v57 = vld [vmem:[%s1 + $0x98] sm:$0xff]
  %v58 = vld [vmem:[%s1 + $0xa0] sm:$0xff]
  %v59 = vld [vmem:[%s1 + $0xa8] sm:$0xff]
  %v60 = vld [vmem:[%s1 + $0xb0] sm:$0xff]
  %v61 = vld [vmem:[%s1 + $0xb8] sm:$0xff]
  %v62 = vld [vmem:[%s1 + $0xc0] sm:$0xff]
  %v63 = vld [vmem:[%s1 + $0xc8] sm:$0xff]
  %v64 = vld [vmem:[%s1 + $0xd0] sm:$0xff]
  %v65 = vld [vmem:[%s1 + $0xd8] sm:$0xff]
  %v66 = vld [vmem:[%s1 + $0xe0] sm:$0xff]
  %v67 = vld [vmem:[%s1 + $0xe8] sm:$0xff]
  %v68 = vld [vmem:[%s1 + $0xf0] sm:$0xff]
  %v69 = vld [vmem:[%s1 + $0xf8] sm:$0xff]
  %70 = vmatpush.msra.mxu0 %v68
  %71 = vmatpush.msra.mxu0 %v66
  %72 = vmatpush.msra.mxu0 %v64
  %73 = vmatpush.msra.mxu0 %v62
  %74 = vmatpush.msra.mxu0 %v60
  %75 = vmatpush.msra.mxu0 %v58
  %76 = vmatpush.msra.mxu0 %v56
  %77 = vmatpush.msra.mxu0 %v54
  %78 = vmatpush.msra.mxu0 %v52
  %79 = vmatpush.msra.mxu0 %v50
  %80 = vmatpush.msra.mxu0 %v48
  %81 = vmatpush.msra.mxu0 %v46
  %82 = vmatpush.msra.mxu0 %v44
  %83 = vmatpush.msra.mxu0 %v42
  %84 = vmatpush.msra.mxu0 %v40
  %85 = vmatpush.msra.mxu0 %v38
  %86 = vmatmul.f32.gmra.mxu0 %v34
  %v87 = vpop.f32.mrf.mxu0
  %v88 = vadd.f32 0.0, %v87
  %89 = vmatmul.f32.gmra.mxu0 %v35
  %v90 = vpop.f32.mrf.mxu0
  %v91 = vadd.f32 0.0, %v90
  %92 = vmatmul.f32.gmra.mxu0 %v36
  %v93 = vpop.f32.mrf.mxu0
  %v94 = vadd.f32 0.0, %v93
  %95 = vmatmul.f32.gmra.mxu0 %v37
  %v96 = vpop.f32.mrf.mxu0
  %v97 = vadd.f32 0.0, %v96
  %98 = vdwg.mxu0
  %99 = vmatpush.msra.mxu0 %v69
  %100 = vmatpush.msra.mxu0 %v67
  %101 = vmatpush.msra.mxu0 %v65
  %102 = vmatpush.msra.mxu0 %v63
  %103 = vmatpush.msra.mxu0 %v61
  %104 = vmatpush.msra.mxu0 %v59
  %105 = vmatpush.msra.mxu0 %v57
  %106 = vmatpush.msra.mxu0 %v55
  %107 = vmatpush.msra.mxu0 %v53
  %108 = vmatpush.msra.mxu0 %v51
  %109 = vmatpush.msra.mxu0 %v49
  %110 = vmatpush.msra.mxu0 %v47
  %111 = vmatpush.msra.mxu0 %v45
  %112 = vmatpush.msra.mxu0 %v43
  %113 = vmatpush.msra.mxu0 %v41
  %114 = vmatpush.msra.mxu0 %v39
  %115 = vmatmul.f32.gmra.mxu0 %v34
  %v116 = vpop.f32.mrf.mxu0
  %v117 = vadd.f32 0.0, %v116
  %118 = vmatmul.f32.gmra.mxu0 %v35
  %v119 = vpop.f32.mrf.mxu0
  %v120 = vadd.f32 0.0, %v119
  %121 = vmatmul.f32.gmra.mxu0 %v36
  %v122 = vpop.f32.mrf.mxu0
  %v123 = vadd.f32 0.0, %v122
  %124 = vmatmul.f32.gmra.mxu0 %v37
  %v125 = vpop.f32.mrf.mxu0
  %v126 = vadd.f32 0.0, %v125
  %127 = vdwg.mxu0
  %v128 = vadd.f32 %v26, %v88
  %v129 = vadd.f32 %v27, %v117
  %v130 = vadd.f32 %v28, %v91
  %v131 = vadd.f32 %v29, %v120
  %v132 = vadd.f32 %v30, %v94
  %v133 = vadd.f32 %v31, %v123
  %v134 = vadd.f32 %v32, %v97
  %v135 = vadd.f32 %v33, %v126
  %136 = vst [vmem:[#allocation2] sm:$0xff] %v128
  %137 = vst [vmem:[#allocation2 + $0x8] sm:$0xff] %v129
  %138 = vst [vmem:[#allocation2 + $0x10] sm:$0xff] %v130
  %139 = vst [vmem:[#allocation2 + $0x18] sm:$0xff] %v131
  %140 = vst [vmem:[#allocation2 + $0x20] sm:$0xff] %v132
  %141 = vst [vmem:[#allocation2 + $0x28] sm:$0xff] %v133
  %142 = vst [vmem:[#allocation2 + $0x30] sm:$0xff] %v134
  %143 = vst [vmem:[#allocation2 + $0x38] sm:$0xff] %v135
  // Predicated region
  $region18: #{rnn_language_model_forward.5} parent=0 // pred_check
    %p144 = pneg %p14
  $region19: #{rnn_language_model_forward.5} parent=0 // pred_check_branch
    %146 = sbr.rel (%p144) target = $region21
  $region20: #{rnn_language_model_forward.5} parent=0 // pred_region
    %v147 = vld [vmem:[#allocation2] sm:$0xff]
    %v148 = vld [vmem:[#allocation2 + $0x8] sm:$0xff]
    %v149 = vld [vmem:[#allocation2 + $0x10] sm:$0xff]
    %v150 = vld [vmem:[#allocation2 + $0x18] sm:$0xff]
    %v151 = vld [vmem:[#allocation2 + $0x20] sm:$0xff]
    %v152 = vld [vmem:[#allocation2 + $0x28] sm:$0xff]
    %v153 = vld [vmem:[#allocation2 + $0x30] sm:$0xff]
    %v154 = vld [vmem:[#allocation2 + $0x38] sm:$0xff]
    %v155 = vld [vmem:[%s2] sm:$0x3]
    %v157 = vperm.slane %v155, 0
    %v158 = vperm.slane %v155, 1
    %v161 = vadd.f32 %v147, %v157
    %v162 = vadd.f32 %v148, %v158
    %v163 = vadd.f32 %v149, %v157
    %v164 = vadd.f32 %v150, %v158
    %v165 = vadd.f32 %v151, %v157
    %v166 = vadd.f32 %v152, %v158
    %v167 = vadd.f32 %v153, %v157
    %v168 = vadd.f32 %v154, %v158
    %169 = vst [vmem:[%s3] sm:$0xff] %v161
    %170 = vst [vmem:[%s3 + $0x8] sm:$0xff] %v162
    %171 = vst [vmem:[%s3 + $0x10] sm:$0xff] %v163
    %172 = vst [vmem:[%s3 + $0x18] sm:$0xff] %v164
    %173 = vst [vmem:[%s3 + $0x20] sm:$0xff] %v165
    %174 = vst [vmem:[%s3 + $0x28] sm:$0xff] %v166
    %175 = vst [vmem:[%s3 + $0x30] sm:$0xff] %v167
    %176 = vst [vmem:[%s3 + $0x38] sm:$0xff] %v168
  $region21: #{rnn_language_model_forward.5} parent=0 // pred_fallthru
    _
  // Predicated region
  $region22: #{rnn_language_model_forward.5} parent=0 // pred_check
    _
  $region23: #{rnn_language_model_forward.5} parent=0 // pred_check_branch
    %178 = sbr.rel (0) target = $region25
  $region24: #{rnn_language_model_forward.5} parent=0 // pred_region
    _
  $region25: #{rnn_language_model_forward.5} parent=0 // pred_fallthru
    _
  // Predicated region
  $region26: #{rnn_language_model_forward.5} parent=0 // pred_check
    _
  $region27: #{rnn_language_model_forward.5} parent=0 // pred_check_branch
    %180 = sbr.rel (0) target = $region29
  $region28: #{rnn_language_model_forward.5} parent=0 // pred_region
    _
  $region29: #{rnn_language_model_forward.5} parent=0 // pred_fallthru
    _

</llo_original>
